<compile_context>
chip_gen: v7x
topology: tpu7x:2x2x1
jax: 0.10.0
libtpu: 0.0.40
codegen_flags: <defaults>
</compile_context>

<pallas_src>
import jax
import jax.numpy as jnp
import numpy as np
from jax.experimental import pallas as pl
from jax.experimental.pallas import tpu as pltpu

LEAKY_SLOPE = 0.01  # PyTorch nn.LeakyReLU default negative_slope


def _leaky_relu(x):
    return jnp.where(x >= 0, x, LEAKY_SLOPE * x)


def learned_prior_kernel(x_ref, w1_ref, wp_ref, b_ref, out_ref):
    """x:(Bp,Kp) f32, w1:(Kp,H) bf16, wp:(H, H+2L) bf16 = [w2|wmu|wlv],
    b:(1, 2H+2L) f32 = [b1|b2|bmu|blv], out:(Bp, 2L) f32 = [mu|logvar]."""
    hidden = w1_ref.shape[1]          # H (=256)
    latent2 = out_ref.shape[1]        # 2 * latent_dim

    # x.type(torch.float32) in the PyTorch module; then bf16 for the MXU.
    x = x_ref[...].astype(jnp.float32).astype(jnp.bfloat16)

    # Static slices of the packed bias slab (loads of small (1, N) rows).
    b1 = b_ref[:, 0:hidden]
    b2 = b_ref[:, hidden:2 * hidden]
    bh = b_ref[:, 2 * hidden:2 * hidden + latent2]

    # prior_nn: Linear -> LeakyReLU -> Linear -> LeakyReLU (f32 accumulation).
    h1 = jnp.dot(x, w1_ref[...], preferred_element_type=jnp.float32) + b1
    h1 = _leaky_relu(h1)
    h2 = jnp.dot(h1.astype(jnp.bfloat16), wp_ref[:, 0:hidden],
                 preferred_element_type=jnp.float32) + b2
    h2 = _leaky_relu(h2)

    # Fused heads: one (H, 2L) matmul produces [mu | logvar].
    heads = jnp.dot(h2.astype(jnp.bfloat16), wp_ref[:, hidden:hidden + latent2],
                    preferred_element_type=jnp.float32) + bh
    out_ref[...] = heads.astype(out_ref.dtype)


def learned_prior_forward(x, params):
    """x: (B, label_dim). Returns (prior_mu, prior_logvar), each (B, latent_dim)."""
    B = x.shape[0]
    label_pad = params["w1"].shape[0]
    hidden = params["w1"].shape[1]
    latent2 = params["w_packed"].shape[1] - hidden
    latent_dim = latent2 // 2

    # Module casts to float32 itself; pad label dim to the stored (aligned) K.
    x = x.astype(jnp.float32)
    if x.shape[1] < label_pad:
        x = jnp.pad(x, ((0, 0), (0, label_pad - x.shape[1])))

    # Pad the batch to a sublane multiple (8) so loads/stores are unmasked.
    Bp = max(8, ((B + 7) // 8) * 8)
    if Bp != B:
        x = jnp.pad(x, ((0, Bp - B), (0, 0)))

    vmem = pl.BlockSpec(memory_space=pltpu.MemorySpace.VMEM)

    flops = 2 * Bp * (label_pad * hidden + hidden * hidden + hidden * latent2)
    bytes_accessed = (
        (params["w1"].size + params["w_packed"].size) * 2   # bf16 weights
        + params["b_all"].size * 4                          # f32 biases
        + x.size * 4                                        # input
        + Bp * latent2 * 4                                  # output
    )

    out = pl.pallas_call(
        learned_prior_kernel,
        out_shape=jax.ShapeDtypeStruct((Bp, latent2), jnp.float32),
        in_specs=[vmem, vmem, vmem, vmem],
        out_specs=vmem,
        cost_estimate=pl.CostEstimate(
            flops=flops, transcendentals=0, bytes_accessed=bytes_accessed),
    )(x, params["w1"], params["w_packed"], params["b_all"])

    # Drop batch padding; split the lane-dense (B, 2L) slab into mu / logvar.
    out = out[:B]
    return out[:, :latent_dim], out[:, latent_dim:]


def init_params(key, label_dim=11, hidden=256, latent_dim=256, label_pad=16):
    """Deterministic synthetic init (PyTorch-style uniform fan-in bound),
    packed for the kernel: bf16 weight slabs + one f32 bias slab."""
    def linear(k, fan_in, fan_out):
        kw, kb = jax.random.split(k)
        bound = 1.0 / np.sqrt(fan_in)
        w = jax.random.uniform(kw, (fan_in, fan_out), jnp.float32, -bound, bound)
        b = jax.random.uniform(kb, (1, fan_out), jnp.float32, -bound, bound)
        return w, b

    k1, k2, k3, k4 = jax.random.split(key, 4)
    w1, b1 = linear(k1, label_dim, hidden)
    w2, b2 = linear(k2, hidden, hidden)
    wmu, bmu = linear(k3, hidden, latent_dim)
    wlv, blv = linear(k4, hidden, latent_dim)

    # Zero-pad w1's K dim 11 -> label_pad (aligned sublanes; numerics unchanged
    # because the extra x columns are also zero).
    w1p = jnp.pad(w1, ((0, label_pad - label_dim), (0, 0)))

    return {
        # packed, bf16 weights: 2 weight DMAs instead of 4
        "w1": w1p.astype(jnp.bfloat16),                                            # (label_pad, H)
        "w_packed": jnp.concatenate([w2, wmu, wlv], axis=1).astype(jnp.bfloat16),  # (H, H+2L)
        # single f32 bias slab: [b1 | b2 | bmu | blv]
        "b_all": jnp.concatenate([b1, b2, bmu, blv], axis=1),                      # (1, 2H+2L)
    }


def reference_forward(x, params):
    """Pure-JAX reference using the same packed bf16 params / f32 accumulation."""
    label_pad = params["w1"].shape[0]
    hidden = params["w1"].shape[1]
    latent2 = params["w_packed"].shape[1] - hidden
    latent_dim = latent2 // 2

    x = x.astype(jnp.float32)
    x = jnp.pad(x, ((0, 0), (0, label_pad - x.shape[1]))).astype(jnp.bfloat16)

    w1 = params["w1"]
    w2 = params["w_packed"][:, :hidden]
    wh = params["w_packed"][:, hidden:]
    b1 = params["b_all"][:, :hidden]
    b2 = params["b_all"][:, hidden:2 * hidden]
    bh = params["b_all"][:, 2 * hidden:]

    h1 = _leaky_relu(jnp.dot(x, w1, preferred_element_type=jnp.float32) + b1)
    h2 = _leaky_relu(jnp.dot(h1.astype(jnp.bfloat16), w2,
                             preferred_element_type=jnp.float32) + b2)
    heads = jnp.dot(h2.astype(jnp.bfloat16), wh,
                    preferred_element_type=jnp.float32) + bh
    return heads[:, :latent_dim], heads[:, latent_dim:]


if __name__ == "__main__":
    key = jax.random.PRNGKey(0)
    kp, kx = jax.random.split(key)

    LABEL_DIM = 11
    LATENT_DIM = 256
    BATCH = 8

    params = init_params(kp, label_dim=LABEL_DIM, hidden=256, latent_dim=LATENT_DIM)

    # label-like input (e.g. soft one-hot); the module casts to float32 itself
    x = jax.random.uniform(kx, (BATCH, LABEL_DIM), jnp.float32)

    mu, logvar = learned_prior_forward(x, params)
    jax.block_until_ready((mu, logvar))

    mu_ref, lv_ref = reference_forward(x, params)
    assert mu.shape == (BATCH, LATENT_DIM) and logvar.shape == (BATCH, LATENT_DIM)
    # bf16 weights/activations with f32 accumulation -> slightly relaxed tolerance
    np.testing.assert_allclose(np.asarray(mu), np.asarray(mu_ref), rtol=2e-3, atol=2e-3)
    np.testing.assert_allclose(np.asarray(logvar), np.asarray(lv_ref), rtol=2e-3, atol=2e-3)

    print("KERNEL_OK")
</pallas_src>

<mosaic_0001>
module attributes {stable_mosaic.version = 11 : i64} {
  func.func @learned_prior_kernel(%arg0: memref<8x16xf32, #tpu.memory_space<vmem>>, %arg1: memref<16x256xbf16, #tpu.memory_space<vmem>>, %arg2: memref<256x768xbf16, #tpu.memory_space<vmem>>, %arg3: memref<1x1024xf32, #tpu.memory_space<vmem>>, %arg4: memref<8x512xf32, #tpu.memory_space<vmem>>) attributes {dimension_semantics = [], scalar_prefetch = 0 : i64, scratch_operands = 0 : i64, tpu.core_type = #tpu.core_type<tc>} {
    %c0 = arith.constant 0 : index
    %c0_0 = arith.constant 0 : index
    %0 = vector.load %arg0[%c0, %c0_0] : memref<8x16xf32, #tpu.memory_space<vmem>>, vector<8x16xf32>
    %1 = arith.truncf %0 : vector<8x16xf32> to vector<8x16xbf16>
    %c0_1 = arith.constant 0 : index
    %c0_2 = arith.constant 0 : index
    %2 = vector.load %arg3[%c0_1, %c0_2] : memref<1x1024xf32, #tpu.memory_space<vmem>>, vector<1x256xf32>
    %c0_3 = arith.constant 0 : index
    %c256 = arith.constant 256 : index
    %3 = vector.load %arg3[%c0_3, %c256] : memref<1x1024xf32, #tpu.memory_space<vmem>>, vector<1x256xf32>
    %c0_4 = arith.constant 0 : index
    %c512 = arith.constant 512 : index
    %4 = vector.load %arg3[%c0_4, %c512] : memref<1x1024xf32, #tpu.memory_space<vmem>>, vector<1x512xf32>
    %c0_5 = arith.constant 0 : index
    %c0_6 = arith.constant 0 : index
    %5 = vector.load %arg1[%c0_5, %c0_6] : memref<16x256xbf16, #tpu.memory_space<vmem>>, vector<16x256xbf16>
    %cst = arith.constant dense<0.000000e+00> : vector<8x256xf32>
    %6 = tpu.matmul %1, %5, %cst {dimension_numbers = #tpu.dot_dimension_numbers<[1], [0], [0], [1], [0, 0, 1, 1], [], []>} : vector<8x16xbf16>, vector<16x256xbf16>, vector<8x256xf32> -> vector<8x256xf32>
    %7 = vector.broadcast %2 : vector<1x256xf32> to vector<8x256xf32>
    %8 = arith.addf %6, %7 : vector<8x256xf32>
    %cst_7 = arith.constant 0.000000e+00 : f32
    %9 = vector.broadcast %cst_7 : f32 to vector<8x256xf32>
    %10 = arith.cmpf oge, %8, %9 : vector<8x256xf32>
    %cst_8 = arith.constant 0.00999999977 : f32
    %11 = vector.broadcast %cst_8 : f32 to vector<8x256xf32>
    %12 = arith.mulf %11, %8 : vector<8x256xf32>
    %13 = arith.select %10, %8, %12 : vector<8x256xi1>, vector<8x256xf32>
    %14 = arith.truncf %13 : vector<8x256xf32> to vector<8x256xbf16>
    %c0_9 = arith.constant 0 : index
    %c0_10 = arith.constant 0 : index
    %15 = vector.load %arg2[%c0_9, %c0_10] : memref<256x768xbf16, #tpu.memory_space<vmem>>, vector<256x256xbf16>
    %cst_11 = arith.constant dense<0.000000e+00> : vector<8x256xf32>
    %16 = tpu.matmul %14, %15, %cst_11 {dimension_numbers = #tpu.dot_dimension_numbers<[1], [0], [0], [1], [0, 0, 1, 1], [], []>} : vector<8x256xbf16>, vector<256x256xbf16>, vector<8x256xf32> -> vector<8x256xf32>
    %17 = vector.broadcast %3 : vector<1x256xf32> to vector<8x256xf32>
    %18 = arith.addf %16, %17 : vector<8x256xf32>
    %cst_12 = arith.constant 0.000000e+00 : f32
    %19 = vector.broadcast %cst_12 : f32 to vector<8x256xf32>
    %20 = arith.cmpf oge, %18, %19 : vector<8x256xf32>
    %cst_13 = arith.constant 0.00999999977 : f32
    %21 = vector.broadcast %cst_13 : f32 to vector<8x256xf32>
    %22 = arith.mulf %21, %18 : vector<8x256xf32>
    %23 = arith.select %20, %18, %22 : vector<8x256xi1>, vector<8x256xf32>
    %24 = arith.truncf %23 : vector<8x256xf32> to vector<8x256xbf16>
    %c0_14 = arith.constant 0 : index
    %c256_15 = arith.constant 256 : index
    %25 = vector.load %arg2[%c0_14, %c256_15] : memref<256x768xbf16, #tpu.memory_space<vmem>>, vector<256x512xbf16>
    %cst_16 = arith.constant dense<0.000000e+00> : vector<8x512xf32>
    %26 = tpu.matmul %24, %25, %cst_16 {dimension_numbers = #tpu.dot_dimension_numbers<[1], [0], [0], [1], [0, 0, 1, 1], [], []>} : vector<8x256xbf16>, vector<256x512xbf16>, vector<8x512xf32> -> vector<8x512xf32>
    %27 = vector.broadcast %4 : vector<1x512xf32> to vector<8x512xf32>
    %28 = arith.addf %26, %27 : vector<8x512xf32>
    %c0_17 = arith.constant 0 : index
    %c0_18 = arith.constant 0 : index
    %29 = vector.load %arg4[%c0_17, %c0_18] : memref<8x512xf32, #tpu.memory_space<vmem>>, vector<8x512xf32>
    tpu.vector_store %arg4[%c0_17, %c0_18], %28 {strides = array<i32>} : memref<8x512xf32, #tpu.memory_space<vmem>>, vector<8x512xf32>,
    return
  }
}

</mosaic_0001>

<llo_original>
// kernel: tpu_custom_call.1
$region0: #{tpu_custom_call.1}
  #allocation0 [shape = 'u32[]', space=smem, size = 0x4, offset = 0x4, fixed_abs, tag = 'smem constant byte address 0x4 - core index']
  #allocation1 [shape = 'u32[144,128]{1,0:T(1,128)}', space=vmem, size = 0x12000, scoped, tag = 'internal scratch']
  %s0 = inlined_call_operand.hbm [shape: f32[8,16], index: 0, kind: input, shape index: {}]
  %s1 = inlined_call_operand.hbm [shape: bf16[16,256], index: 1, kind: input, shape index: {}]
  %s2 = inlined_call_operand.hbm [shape: bf16[256,768], index: 2, kind: input, shape index: {}]
  %s3 = inlined_call_operand.vmem [shape: f32[1,1024], index: 3, kind: input, shape index: {}]
  %s4 = inlined_call_operand.hbm [shape: f32[8,512], index: 4, kind: output, shape index: {}]
  %s5 = sld [smem:[#allocation0]]
  $region38: #{tpu_custom_call.1} parent=0
    _
  %s7 = ssub.s32 1, %s5
  %s8 = scalar_select 0, %s7, %s5
  $region1: #{tpu_custom_call.1} parent=0
    #allocation2 [shape = 'u8[4096]{0}', space=vmem, size = 0x1000, scoped, tag = 'input window, operand 0, single buffered']
    #allocation3 [shape = 's32[1]{0}', space=sflag, size = 0x4, scoped, tag = 'scoped memory for tpu_custom_call.1']
    #allocation4 [shape = 's32[1]{0}', space=sflag, size = 0x4, scoped, tag = 'scoped memory for tpu_custom_call.1']
    #allocation5 [shape = 'u8[8192]{0}', space=vmem, size = 0x2000, scoped, tag = 'input window, operand 1, single buffered']
    #allocation6 [shape = 's32[1]{0}', space=sflag, size = 0x4, scoped, tag = 'scoped memory for tpu_custom_call.1']
    #allocation7 [shape = 'u8[393216]{0}', space=vmem, size = 0x60000, scoped, tag = 'input window, operand 2, single buffered']
    #allocation8 [shape = 'u8[16384]{0}', space=vmem, size = 0x4000, scoped, tag = 'output window, operand 0, single buffered']
    %9 = vsyncpa [#allocation3], 0
    %10 = vsyncpa [#allocation6], 0
    %11 = vsyncpa [#allocation4], 0
    // Predicated region
    $region2: #{tpu_custom_call.1} parent=1 // pred_check
      _
    $region3: #{tpu_custom_call.1} parent=1 // pred_check_branch
      %13 = sbr.rel (0) target = $region5
    $region4: #{tpu_custom_call.1} parent=1 // pred_region
      %s15 = ssub.s32 128, 128
      %16 = vsyncadd [#allocation3], %s15
      %s18 = sshll.u32 [#allocation2], 4
      %s19 = int_to_ptr.vmem [resolvable:$true] %s18
      %21 = dma.hbm_to_vmem [thread:$0]  %s0, 128, %s19, [#allocation3]
    $region5: #{tpu_custom_call.1} parent=1 // pred_fallthru
      _
    // Predicated region
    $region6: #{tpu_custom_call.1} parent=1 // pred_check
      _
    $region7: #{tpu_custom_call.1} parent=1 // pred_check_branch
      %23 = sbr.rel (0) target = $region9
    $region8: #{tpu_custom_call.1} parent=1 // pred_region
      %s25 = ssub.s32 256, 256
      %26 = vsyncadd [#allocation6], %s25
      %s27 = sshll.u32 [#allocation5], 4
      %s28 = int_to_ptr.vmem [resolvable:$true] %s27
      %33 = dma.hbm_to_vmem [thread:$0]  %s1, 256, %s28, [#allocation6], 128, 128, 8
    $region9: #{tpu_custom_call.1} parent=1 // pred_fallthru
      _
    // Predicated region
    $region10: #{tpu_custom_call.1} parent=1 // pred_check
      _
    $region11: #{tpu_custom_call.1} parent=1 // pred_check_branch
      %35 = sbr.rel (0) target = $region13
    $region12: #{tpu_custom_call.1} parent=1 // pred_region
      %s37 = ssub.s32 12288, 12288
      %38 = vsyncadd [#allocation6], %s37
      %s39 = sshll.u32 [#allocation7], 4
      %s40 = int_to_ptr.vmem [resolvable:$true] %s39
      %45 = dma.hbm_to_vmem [thread:$0]  %s2, 12288, %s40, [#allocation6], 384, 384, 24
    $region13: #{tpu_custom_call.1} parent=1 // pred_fallthru
      _
    // Predicated region
    $region14: #{tpu_custom_call.1} parent=1 // pred_check
      _
    $region15: #{tpu_custom_call.1} parent=1 // pred_check_branch
      %47 = sbr.rel (0) target = $region17
    $region16: #{tpu_custom_call.1} parent=1 // pred_region
      _
    $region17: #{tpu_custom_call.1} parent=1 // pred_fallthru
      _
    // Predicated region
    $region18: #{tpu_custom_call.1} parent=1 // pred_check
      _
    $region19: #{tpu_custom_call.1} parent=1 // pred_check_branch
      %49 = sbr.rel (0) target = $region21
    $region20: #{tpu_custom_call.1} parent=1 // pred_region
      %50 = dma.done [#allocation3], 128
    $region21: #{tpu_custom_call.1} parent=1 // pred_fallthru
      _
    // Predicated region
    $region22: #{tpu_custom_call.1} parent=1 // pred_check
      _
    $region23: #{tpu_custom_call.1} parent=1 // pred_check_branch
      %52 = sbr.rel (0) target = $region25
    $region24: #{tpu_custom_call.1} parent=1 // pred_region
      %53 = dma.done [#allocation6], 256
    $region25: #{tpu_custom_call.1} parent=1 // pred_fallthru
      _
    // Predicated region
    $region26: #{tpu_custom_call.1} parent=1 // pred_check
      _
    $region27: #{tpu_custom_call.1} parent=1 // pred_check_branch
      %55 = sbr.rel (0) target = $region29
    $region28: #{tpu_custom_call.1} parent=1 // pred_region
      %56 = dma.done [#allocation6], 12288
    $region29: #{tpu_custom_call.1} parent=1 // pred_fallthru
      _
    %v58 = vld [vmem:[#allocation2] sm:$0xff]
    %v59 = vpack.c.bf16 %v58, %v58
    %v60 = vld [vmem:[%s3] sm:$0x3]
    %v61 = vld [vmem:[%s3 + $0x2] sm:$0x3]
    %v62 = vld [vmem:[%s3 + $0x4] sm:$0xf]
    %v63 = vld [vmem:[#allocation5] sm:$0xff]
    %v64 = vld [vmem:[#allocation5 + $0x8] sm:$0xff]
    %v66 = vlaneseq
    %v67 = vshrl.u32 %v66, 7
    %v68 = vsub.s32 0, %v67
    %v69 = vrot.slane %v60, %v68
    %v70 = vlaneseq
    %v71 = vshrl.u32 %v70, 7
    %v72 = vsub.s32 1, %v71
    %v73 = vrot.slane %v60, %v72
    %v78 = vunpack.c.l.b16 %v63
    %v79 = vunpack.c.h.b16 %v63
    %v80 = vunpack.c.l.b16 %v64
    %v81 = vunpack.c.h.b16 %v64
    %v82 = vpack.c.b16 %v80, %v78
    %v83 = vpack.c.b16 %v81, %v79
    %vm86 = vcmask 130048
    %v88 = vsel %vm86, %v59, 0
    %90 = vmatprep.subr.bf16.mxu0 %v83
    %91 = vmatpush1.bf16.msra.mxu0 %v82
    %92 = vmatprep.subr.bf16.mxu0 0
    %93 = vmatpush1.bf16.msra.mxu0 0
    %94 = vmatprep.subr.bf16.mxu0 0
    %95 = vmatpush1.bf16.msra.mxu0 0
    %96 = vmatprep.subr.bf16.mxu0 0
    %97 = vmatpush1.bf16.msra.mxu0 0
    %98 = vmatprep.subr.bf16.mxu0 0
    %99 = vmatpush1.bf16.msra.mxu0 0
    %100 = vmatprep.subr.bf16.mxu0 0
    %101 = vmatpush1.bf16.msra.mxu0 0
    %102 = vmatprep.subr.bf16.mxu0 0
    %103 = vmatpush1.bf16.msra.mxu0 0
    %104 = vmatprep.subr.bf16.mxu0 0
    %105 = vmatpush1.bf16.msra.mxu0 0
    %106 = vmatprep.subr.bf16.mxu0 0
    %107 = vmatpush1.bf16.msra.mxu0 0
    %108 = vmatprep.subr.bf16.mxu0 0
    %109 = vmatpush1.bf16.msra.mxu0 0
    %110 = vmatprep.subr.bf16.mxu0 0
    %111 = vmatpush1.bf16.msra.mxu0 0
    %112 = vmatprep.subr.bf16.mxu0 0
    %113 = vmatpush1.bf16.msra.mxu0 0
    %114 = vmatprep.subr.bf16.mxu0 0
    %115 = vmatpush1.bf16.msra.mxu0 0
    %116 = vmatprep.subr.bf16.mxu0 0
    %117 = vmatpush1.bf16.msra.mxu0 0
    %118 = vmatprep.subr.bf16.mxu0 0
    %119 = vmatpush1.bf16.msra.mxu0 0
    %120 = vmatprep.subr.bf16.mxu0 0
    %121 = vmatpush1.bf16.msra.mxu0 0
    %122 = vmatprep.mubr.bf16.mxu0 0
    %123 = vmatmul.mubr.bf16.gmra.mrb[0].mxu0 %v88
    %v124 = vpop.f32.mrb[0].mxu0
    %v125 = vadd.f32 %v69, %v124
    %v126 = vpop.f32.mrb[0].mxu0
    %v127 = vadd.f32 %v73, %v126
    %v128 = vpop.f32.mrb[0].mxu0
    %v129 = vpop.f32.mrb[0].mxu0
    %130 = vdwg.mxu0
    %vm131 = vcmp.ge.f32.partialorder %v125, 0.0
    %vm132 = vcmp.ge.f32.partialorder %v127, 0.0
    %v133 = vmul.f32 %v125, 0.01
    %v134 = vmul.f32 %v127, 0.01
    %v135 = vsel %vm131, %v125, %v133
    %v136 = vsel %vm132, %v127, %v134
    %v137 = vpack.c.bf16 %v135, %v135
    %v138 = vpack.c.bf16 %v136, %v136
    %v139 = vld [vmem:[#allocation7] sm:$0xff]
    %v140 = vld [vmem:[#allocation7 + $0x18] sm:$0xff]
    %v141 = vld [vmem:[#allocation7 + $0x30] sm:$0xff]
    %v142 = vld [vmem:[#allocation7 + $0x48] sm:$0xff]
    %v143 = vld [vmem:[#allocation7 + $0x60] sm:$0xff]
    %v144 = vld [vmem:[#allocation7 + $0x78] sm:$0xff]
    %v145 = vld [vmem:[#allocation7 + $0x90] sm:$0xff]
    %v146 = vld [vmem:[#allocation7 + $0xa8] sm:$0xff]
    %v147 = vld [vmem:[#allocation7 + $0xc0] sm:$0xff]
    %v148 = vld [vmem:[#allocation7 + $0xd8] sm:$0xff]
    %v149 = vld [vmem:[#allocation7 + $0xf0] sm:$0xff]
    %v150 = vld [vmem:[#allocation7 + $0x108] sm:$0xff]
    %v151 = vld [vmem:[#allocation7 + $0x120] sm:$0xff]
    %v152 = vld [vmem:[#allocation7 + $0x138] sm:$0xff]
    %v153 = vld [vmem:[#allocation7 + $0x150] sm:$0xff]
    %v154 = vld [vmem:[#allocation7 + $0x168] sm:$0xff]
    %v155 = vld [vmem:[#allocation7 + $0x180] sm:$0xff]
    %v156 = vld [vmem:[#allocation7 + $0x198] sm:$0xff]
    %v157 = vld [vmem:[#allocation7 + $0x1b0] sm:$0xff]
    %v158 = vld [vmem:[#allocation7 + $0x1c8] sm:$0xff]
    %v159 = vld [vmem:[#allocation7 + $0x1e0] sm:$0xff]
    %v160 = vld [vmem:[#allocation7 + $0x1f8] sm:$0xff]
    %v161 = vld [vmem:[#allocation7 + $0x210] sm:$0xff]
    %v162 = vld [vmem:[#allocation7 + $0x228] sm:$0xff]
    %v163 = vld [vmem:[#allocation7 + $0x240] sm:$0xff]
    %v164 = vld [vmem:[#allocation7 + $0x258] sm:$0xff]
    %v165 = vld [vmem:[#allocation7 + $0x270] sm:$0xff]
    %v166 = vld [vmem:[#allocation7 + $0x288] sm:$0xff]
    %v167 = vld [vmem:[#allocation7 + $0x2a0] sm:$0xff]
    %v168 = vld [vmem:[#allocation7 + $0x2b8] sm:$0xff]
    %v169 = vld [vmem:[#allocation7 + $0x2d0] sm:$0xff]
    %v170 = vld [vmem:[#allocation7 + $0x2e8] sm:$0xff]
    %v172 = vlaneseq
    %v173 = vshrl.u32 %v172, 7
    %v174 = vsub.s32 0, %v173
    %v175 = vrot.slane %v61, %v174
    %v176 = vlaneseq
    %v177 = vshrl.u32 %v176, 7
    %v178 = vsub.s32 1, %v177
    %v179 = vrot.slane %v61, %v178
    %v214 = vunpack.c.l.b16 %v139
    %v215 = vunpack.c.h.b16 %v139
    %v216 = vunpack.c.l.b16 %v140
    %v217 = vunpack.c.h.b16 %v140
    %v218 = vunpack.c.l.b16 %v141
    %v219 = vunpack.c.h.b16 %v141
    %v220 = vunpack.c.l.b16 %v142
    %v221 = vunpack.c.h.b16 %v142
    %v222 = vunpack.c.l.b16 %v143
    %v223 = vunpack.c.h.b16 %v143
    %v224 = vunpack.c.l.b16 %v144
    %v225 = vunpack.c.h.b16 %v144
    %v226 = vunpack.c.l.b16 %v145
    %v227 = vunpack.c.h.b16 %v145
    %v228 = vunpack.c.l.b16 %v146
    %v229 = vunpack.c.h.b16 %v146
    %v230 = vunpack.c.l.b16 %v147
    %v231 = vunpack.c.h.b16 %v147
    %v232 = vunpack.c.l.b16 %v148
    %v233 = vunpack.c.h.b16 %v148
    %v234 = vunpack.c.l.b16 %v149
    %v235 = vunpack.c.h.b16 %v149
    %v236 = vunpack.c.l.b16 %v150
    %v237 = vunpack.c.h.b16 %v150
    %v238 = vunpack.c.l.b16 %v151
    %v239 = vunpack.c.h.b16 %v151
    %v240 = vunpack.c.l.b16 %v152
    %v241 = vunpack.c.h.b16 %v152
    %v242 = vunpack.c.l.b16 %v153
    %v243 = vunpack.c.h.b16 %v153
    %v244 = vunpack.c.l.b16 %v154
    %v245 = vunpack.c.h.b16 %v154
    %v246 = vunpack.c.l.b16 %v155
    %v247 = vunpack.c.h.b16 %v155
    %v248 = vunpack.c.l.b16 %v156
    %v249 = vunpack.c.h.b16 %v156
    %v250 = vunpack.c.l.b16 %v157
    %v251 = vunpack.c.h.b16 %v157
    %v252 = vunpack.c.l.b16 %v158
    %v253 = vunpack.c.h.b16 %v158
    %v254 = vunpack.c.l.b16 %v159
    %v255 = vunpack.c.h.b16 %v159
    %v256 = vunpack.c.l.b16 %v160
    %v257 = vunpack.c.h.b16 %v160
    %v258 = vunpack.c.l.b16 %v161
    %v259 = vunpack.c.h.b16 %v161
    %v260 = vunpack.c.l.b16 %v162
    %v261 = vunpack.c.h.b16 %v162
    %v262 = vunpack.c.l.b16 %v163
    %v263 = vunpack.c.h.b16 %v163
    %v264 = vunpack.c.l.b16 %v164
    %v265 = vunpack.c.h.b16 %v164
    %v266 = vunpack.c.l.b16 %v165
    %v267 = vunpack.c.h.b16 %v165
    %v268 = vunpack.c.l.b16 %v166
    %v269 = vunpack.c.h.b16 %v166
    %v270 = vunpack.c.l.b16 %v167
    %v271 = vunpack.c.h.b16 %v167
    %v272 = vunpack.c.l.b16 %v168
    %v273 = vunpack.c.h.b16 %v168
    %v274 = vunpack.c.l.b16 %v169
    %v275 = vunpack.c.h.b16 %v169
    %v276 = vunpack.c.l.b16 %v170
    %v277 = vunpack.c.h.b16 %v170
    %v278 = vpack.c.b16 %v216, %v214
    %v279 = vpack.c.b16 %v217, %v215
    %v280 = vpack.c.b16 %v220, %v218
    %v281 = vpack.c.b16 %v221, %v219
    %v282 = vpack.c.b16 %v224, %v222
    %v283 = vpack.c.b16 %v225, %v223
    %v284 = vpack.c.b16 %v228, %v226
    %v285 = vpack.c.b16 %v229, %v227
    %v286 = vpack.c.b16 %v232, %v230
    %v287 = vpack.c.b16 %v233, %v231
    %v288 = vpack.c.b16 %v236, %v234
    %v289 = vpack.c.b16 %v237, %v235
    %v290 = vpack.c.b16 %v240, %v238
    %v291 = vpack.c.b16 %v241, %v239
    %v292 = vpack.c.b16 %v244, %v242
    %v293 = vpack.c.b16 %v245, %v243
    %v294 = vpack.c.b16 %v248, %v246
    %v295 = vpack.c.b16 %v249, %v247
    %v296 = vpack.c.b16 %v252, %v250
    %v297 = vpack.c.b16 %v253, %v251
    %v298 = vpack.c.b16 %v256, %v254
    %v299 = vpack.c.b16 %v257, %v255
    %v300 = vpack.c.b16 %v260, %v258
    %v301 = vpack.c.b16 %v261, %v259
    %v302 = vpack.c.b16 %v264, %v262
    %v303 = vpack.c.b16 %v265, %v263
    %v304 = vpack.c.b16 %v268, %v266
    %v305 = vpack.c.b16 %v269, %v267
    %v306 = vpack.c.b16 %v272, %v270
    %v307 = vpack.c.b16 %v273, %v271
    %v308 = vpack.c.b16 %v276, %v274
    %v309 = vpack.c.b16 %v277, %v275
    %342 = vmatprep.subr.bf16.mxu0 %v279
    %343 = vmatpush1.bf16.msra.mxu0 %v278
    %344 = vmatprep.subr.bf16.mxu0 %v281
    %345 = vmatpush1.bf16.msra.mxu0 %v280
    %346 = vmatprep.subr.bf16.mxu0 %v283
    %347 = vmatpush1.bf16.msra.mxu0 %v282
    %348 = vmatprep.subr.bf16.mxu0 %v285
    %349 = vmatpush1.bf16.msra.mxu0 %v284
    %350 = vmatprep.subr.bf16.mxu0 %v287
    %351 = vmatpush1.bf16.msra.mxu0 %v286
    %352 = vmatprep.subr.bf16.mxu0 %v289
    %353 = vmatpush1.bf16.msra.mxu0 %v288
    %354 = vmatprep.subr.bf16.mxu0 %v291
    %355 = vmatpush1.bf16.msra.mxu0 %v290
    %356 = vmatprep.subr.bf16.mxu0 %v293
    %357 = vmatpush1.bf16.msra.mxu0 %v292
    %358 = vmatprep.subr.bf16.mxu0 %v295
    %359 = vmatpush1.bf16.msra.mxu0 %v294
    %360 = vmatprep.subr.bf16.mxu0 %v297
    %361 = vmatpush1.bf16.msra.mxu0 %v296
    %362 = vmatprep.subr.bf16.mxu0 %v299
    %363 = vmatpush1.bf16.msra.mxu0 %v298
    %364 = vmatprep.subr.bf16.mxu0 %v301
    %365 = vmatpush1.bf16.msra.mxu0 %v300
    %366 = vmatprep.subr.bf16.mxu0 %v303
    %367 = vmatpush1.bf16.msra.mxu0 %v302
    %368 = vmatprep.subr.bf16.mxu0 %v305
    %369 = vmatpush1.bf16.msra.mxu0 %v304
    %370 = vmatprep.subr.bf16.mxu0 %v307
    %371 = vmatpush1.bf16.msra.mxu0 %v306
    %372 = vmatprep.subr.bf16.mxu0 %v309
    %373 = vmatpush1.bf16.msra.mxu0 %v308
    %374 = vmatprep.mubr.bf16.mxu0 %v138
    %375 = vmatmul.mubr.bf16.gmra.mrb[0].mxu0 %v137
    %v376 = vpop.f32.mrb[0].mxu0
    %v377 = vadd.f32 %v175, %v376
    %v378 = vpop.f32.mrb[0].mxu0
    %v379 = vadd.f32 %v179, %v378
    %v380 = vpop.f32.mrb[0].mxu0
    %v381 = vpop.f32.mrb[0].mxu0
    %382 = vdwg.mxu0
    %vm383 = vcmp.ge.f32.partialorder %v377, 0.0
    %vm384 = vcmp.ge.f32.partialorder %v379, 0.0
    %v385 = vmul.f32 %v377, 0.01
    %v386 = vmul.f32 %v379, 0.01
    %v387 = vsel %vm383, %v377, %v385
    %v388 = vsel %vm384, %v379, %v386
    %v389 = vpack.c.bf16 %v387, %v387
    %v390 = vpack.c.bf16 %v388, %v388
    %v391 = vld [vmem:[#allocation7 + $0x8] sm:$0xff]
    %v392 = vld [vmem:[#allocation7 + $0x10] sm:$0xff]
    %v393 = vld [vmem:[#allocation7 + $0x20] sm:$0xff]
    %v394 = vld [vmem:[#allocation7 + $0x28] sm:$0xff]
    %v395 = vld [vmem:[#allocation7 + $0x38] sm:$0xff]
    %v396 = vld [vmem:[#allocation7 + $0x40] sm:$0xff]
    %v397 = vld [vmem:[#allocation7 + $0x50] sm:$0xff]
    %v398 = vld [vmem:[#allocation7 + $0x58] sm:$0xff]
    %v399 = vld [vmem:[#allocation7 + $0x68] sm:$0xff]
    %v400 = vld [vmem:[#allocation7 + $0x70] sm:$0xff]
    %v401 = vld [vmem:[#allocation7 + $0x80] sm:$0xff]
    %v402 = vld [vmem:[#allocation7 + $0x88] sm:$0xff]
    %v403 = vld [vmem:[#allocation7 + $0x98] sm:$0xff]
    %v404 = vld [vmem:[#allocation7 + $0xa0] sm:$0xff]
    %v405 = vld [vmem:[#allocation7 + $0xb0] sm:$0xff]
    %v406 = vld [vmem:[#allocation7 + $0xb8] sm:$0xff]
    %v407 = vld [vmem:[#allocation7 + $0xc8] sm:$0xff]
    %v408 = vld [vmem:[#allocation7 + $0xd0] sm:$0xff]
    %v409 = vld [vmem:[#allocation7 + $0xe0] sm:$0xff]
    %v410 = vld [vmem:[#allocation7 + $0xe8] sm:$0xff]
    %v411 = vld [vmem:[#allocation7 + $0xf8] sm:$0xff]
    %v412 = vld [vmem:[#allocation7 + $0x100] sm:$0xff]
    %v413 = vld [vmem:[#allocation7 + $0x110] sm:$0xff]
    %v414 = vld [vmem:[#allocation7 + $0x118] sm:$0xff]
    %v415 = vld [vmem:[#allocation7 + $0x128] sm:$0xff]
    %v416 = vld [vmem:[#allocation7 + $0x130] sm:$0xff]
    %v417 = vld [vmem:[#allocation7 + $0x140] sm:$0xff]
    %v418 = vld [vmem:[#allocation7 + $0x148] sm:$0xff]
    %v419 = vld [vmem:[#allocation7 + $0x158] sm:$0xff]
    %v420 = vld [vmem:[#allocation7 + $0x160] sm:$0xff]
    %v421 = vld [vmem:[#allocation7 + $0x170] sm:$0xff]
    %v422 = vld [vmem:[#allocation7 + $0x178] sm:$0xff]
    %v423 = vld [vmem:[#allocation7 + $0x188] sm:$0xff]
    %v424 = vld [vmem:[#allocation7 + $0x190] sm:$0xff]
    %v425 = vld [vmem:[#allocation7 + $0x1a0] sm:$0xff]
    %v426 = vld [vmem:[#allocation7 + $0x1a8] sm:$0xff]
    %v427 = vld [vmem:[#allocation7 + $0x1b8] sm:$0xff]
    %v428 = vld [vmem:[#allocation7 + $0x1c0] sm:$0xff]
    %v429 = vld [vmem:[#allocation7 + $0x1d0] sm:$0xff]
    %v430 = vld [vmem:[#allocation7 + $0x1d8] sm:$0xff]
    %v431 = vld [vmem:[#allocation7 + $0x1e8] sm:$0xff]
    %v432 = vld [vmem:[#allocation7 + $0x1f0] sm:$0xff]
    %v433 = vld [vmem:[#allocation7 + $0x200] sm:$0xff]
    %v434 = vld [vmem:[#allocation7 + $0x208] sm:$0xff]
    %v435 = vld [vmem:[#allocation7 + $0x218] sm:$0xff]
    %v436 = vld [vmem:[#allocation7 + $0x220] sm:$0xff]
    %v437 = vld [vmem:[#allocation7 + $0x230] sm:$0xff]
    %v438 = vld [vmem:[#allocation7 + $0x238] sm:$0xff]
    %v439 = vld [vmem:[#allocation7 + $0x248] sm:$0xff]
    %v440 = vld [vmem:[#allocation7 + $0x250] sm:$0xff]
    %v441 = vld [vmem:[#allocation7 + $0x260] sm:$0xff]
    %v442 = vld [vmem:[#allocation7 + $0x268] sm:$0xff]
    %v443 = vld [vmem:[#allocation7 + $0x278] sm:$0xff]
    %v444 = vld [vmem:[#allocation7 + $0x280] sm:$0xff]
    %v445 = vld [vmem:[#allocation7 + $0x290] sm:$0xff]
    %v446 = vld [vmem:[#allocation7 + $0x298] sm:$0xff]
    %v447 = vld [vmem:[#allocation7 + $0x2a8] sm:$0xff]
    %v448 = vld [vmem:[#allocation7 + $0x2b0] sm:$0xff]
    %v449 = vld [vmem:[#allocation7 + $0x2c0] sm:$0xff]
    %v450 = vld [vmem:[#allocation7 + $0x2c8] sm:$0xff]
    %v451 = vld [vmem:[#allocation7 + $0x2d8] sm:$0xff]
    %v452 = vld [vmem:[#allocation7 + $0x2e0] sm:$0xff]
    %v453 = vld [vmem:[#allocation7 + $0x2f0] sm:$0xff]
    %v454 = vld [vmem:[#allocation7 + $0x2f8] sm:$0xff]
    %v456 = vlaneseq
    %v457 = vshrl.u32 %v456, 7
    %v458 = vsub.s32 0, %v457
    %v459 = vrot.slane %v62, %v458
    %v460 = vlaneseq
    %v461 = vshrl.u32 %v460, 7
    %v462 = vsub.s32 1, %v461
    %v463 = vrot.slane %v62, %v462
    %v464 = vlaneseq
    %v465 = vshrl.u32 %v464, 7
    %v466 = vsub.s32 2, %v465
    %v467 = vrot.slane %v62, %v466
    %v468 = vlaneseq
    %v469 = vshrl.u32 %v468, 7
    %v470 = vsub.s32 3, %v469
    %v471 = vrot.slane %v62, %v470
    %v540 = vunpack.c.l.b16 %v391
    %v541 = vunpack.c.h.b16 %v391
    %v542 = vunpack.c.l.b16 %v392
    %v543 = vunpack.c.h.b16 %v392
    %v544 = vunpack.c.l.b16 %v393
    %v545 = vunpack.c.h.b16 %v393
    %v546 = vunpack.c.l.b16 %v394
    %v547 = vunpack.c.h.b16 %v394
    %v548 = vunpack.c.l.b16 %v395
    %v549 = vunpack.c.h.b16 %v395
    %v550 = vunpack.c.l.b16 %v396
    %v551 = vunpack.c.h.b16 %v396
    %v552 = vunpack.c.l.b16 %v397
    %v553 = vunpack.c.h.b16 %v397
    %v554 = vunpack.c.l.b16 %v398
    %v555 = vunpack.c.h.b16 %v398
    %v556 = vunpack.c.l.b16 %v399
    %v557 = vunpack.c.h.b16 %v399
    %v558 = vunpack.c.l.b16 %v400
    %v559 = vunpack.c.h.b16 %v400
    %v560 = vunpack.c.l.b16 %v401
    %v561 = vunpack.c.h.b16 %v401
    %v562 = vunpack.c.l.b16 %v402
    %v563 = vunpack.c.h.b16 %v402
    %v564 = vunpack.c.l.b16 %v403
    %v565 = vunpack.c.h.b16 %v403
    %v566 = vunpack.c.l.b16 %v404
    %v567 = vunpack.c.h.b16 %v404
    %v568 = vunpack.c.l.b16 %v405
    %v569 = vunpack.c.h.b16 %v405
    %v570 = vunpack.c.l.b16 %v406
    %v571 = vunpack.c.h.b16 %v406
    %v572 = vunpack.c.l.b16 %v407
    %v573 = vunpack.c.h.b16 %v407
    %v574 = vunpack.c.l.b16 %v408
    %v575 = vunpack.c.h.b16 %v408
    %v576 = vunpack.c.l.b16 %v409
    %v577 = vunpack.c.h.b16 %v409
    %v578 = vunpack.c.l.b16 %v410
    %v579 = vunpack.c.h.b16 %v410
    %v580 = vunpack.c.l.b16 %v411
    %v581 = vunpack.c.h.b16 %v411
    %v582 = vunpack.c.l.b16 %v412
    %v583 = vunpack.c.h.b16 %v412
    %v584 = vunpack.c.l.b16 %v413
    %v585 = vunpack.c.h.b16 %v413
    %v586 = vunpack.c.l.b16 %v414
    %v587 = vunpack.c.h.b16 %v414
    %v588 = vunpack.c.l.b16 %v415
    %v589 = vunpack.c.h.b16 %v415
    %v590 = vunpack.c.l.b16 %v416
    %v591 = vunpack.c.h.b16 %v416
    %v592 = vunpack.c.l.b16 %v417
    %v593 = vunpack.c.h.b16 %v417
    %v594 = vunpack.c.l.b16 %v418
    %v595 = vunpack.c.h.b16 %v418
    %v596 = vunpack.c.l.b16 %v419
    %v597 = vunpack.c.h.b16 %v419
    %v598 = vunpack.c.l.b16 %v420
    %v599 = vunpack.c.h.b16 %v420
    %v600 = vunpack.c.l.b16 %v421
    %v601 = vunpack.c.h.b16 %v421
    %v602 = vunpack.c.l.b16 %v422
    %v603 = vunpack.c.h.b16 %v422
    %v604 = vunpack.c.l.b16 %v423
    %v605 = vunpack.c.h.b16 %v423
    %v606 = vunpack.c.l.b16 %v424
    %v607 = vunpack.c.h.b16 %v424
    %v608 = vunpack.c.l.b16 %v425
    %v609 = vunpack.c.h.b16 %v425
    %v610 = vunpack.c.l.b16 %v426
    %v611 = vunpack.c.h.b16 %v426
    %v612 = vunpack.c.l.b16 %v427
    %v613 = vunpack.c.h.b16 %v427
    %v614 = vunpack.c.l.b16 %v428
    %v615 = vunpack.c.h.b16 %v428
    %v616 = vunpack.c.l.b16 %v429
    %v617 = vunpack.c.h.b16 %v429
    %v618 = vunpack.c.l.b16 %v430
    %v619 = vunpack.c.h.b16 %v430
    %v620 = vunpack.c.l.b16 %v431
    %v621 = vunpack.c.h.b16 %v431
    %v622 = vunpack.c.l.b16 %v432
    %v623 = vunpack.c.h.b16 %v432
    %v624 = vunpack.c.l.b16 %v433
    %v625 = vunpack.c.h.b16 %v433
    %v626 = vunpack.c.l.b16 %v434
    %v627 = vunpack.c.h.b16 %v434
    %v628 = vunpack.c.l.b16 %v435
    %v629 = vunpack.c.h.b16 %v435
    %v630 = vunpack.c.l.b16 %v436
    %v631 = vunpack.c.h.b16 %v436
    %v632 = vunpack.c.l.b16 %v437
    %v633 = vunpack.c.h.b16 %v437
    %v634 = vunpack.c.l.b16 %v438
    %v635 = vunpack.c.h.b16 %v438
    %v636 = vunpack.c.l.b16 %v439
    %v637 = vunpack.c.h.b16 %v439
    %v638 = vunpack.c.l.b16 %v440
    %v639 = vunpack.c.h.b16 %v440
    %v640 = vunpack.c.l.b16 %v441
    %v641 = vunpack.c.h.b16 %v441
    %v642 = vunpack.c.l.b16 %v442
    %v643 = vunpack.c.h.b16 %v442
    %v644 = vunpack.c.l.b16 %v443
    %v645 = vunpack.c.h.b16 %v443
    %v646 = vunpack.c.l.b16 %v444
    %v647 = vunpack.c.h.b16 %v444
    %v648 = vunpack.c.l.b16 %v445
    %v649 = vunpack.c.h.b16 %v445
    %v650 = vunpack.c.l.b16 %v446
    %v651 = vunpack.c.h.b16 %v446
    %v652 = vunpack.c.l.b16 %v447
    %v653 = vunpack.c.h.b16 %v447
    %v654 = vunpack.c.l.b16 %v448
    %v655 = vunpack.c.h.b16 %v448
    %v656 = vunpack.c.l.b16 %v449
    %v657 = vunpack.c.h.b16 %v449
    %v658 = vunpack.c.l.b16 %v450
    %v659 = vunpack.c.h.b16 %v450
    %v660 = vunpack.c.l.b16 %v451
    %v661 = vunpack.c.h.b16 %v451
    %v662 = vunpack.c.l.b16 %v452
    %v663 = vunpack.c.h.b16 %v452
    %v664 = vunpack.c.l.b16 %v453
    %v665 = vunpack.c.h.b16 %v453
    %v666 = vunpack.c.l.b16 %v454
    %v667 = vunpack.c.h.b16 %v454
    %v668 = vpack.c.b16 %v544, %v540
    %v669 = vpack.c.b16 %v545, %v541
    %v670 = vpack.c.b16 %v546, %v542
    %v671 = vpack.c.b16 %v547, %v543
    %v672 = vpack.c.b16 %v552, %v548
    %v673 = vpack.c.b16 %v553, %v549
    %v674 = vpack.c.b16 %v554, %v550
    %v675 = vpack.c.b16 %v555, %v551
    %v676 = vpack.c.b16 %v560, %v556
    %v677 = vpack.c.b16 %v561, %v557
    %v678 = vpack.c.b16 %v562, %v558
    %v679 = vpack.c.b16 %v563, %v559
    %v680 = vpack.c.b16 %v568, %v564
    %v681 = vpack.c.b16 %v569, %v565
    %v682 = vpack.c.b16 %v570, %v566
    %v683 = vpack.c.b16 %v571, %v567
    %v684 = vpack.c.b16 %v576, %v572
    %v685 = vpack.c.b16 %v577, %v573
    %v686 = vpack.c.b16 %v578, %v574
    %v687 = vpack.c.b16 %v579, %v575
    %v688 = vpack.c.b16 %v584, %v580
    %v689 = vpack.c.b16 %v585, %v581
    %v690 = vpack.c.b16 %v586, %v582
    %v691 = vpack.c.b16 %v587, %v583
    %v692 = vpack.c.b16 %v592, %v588
    %v693 = vpack.c.b16 %v593, %v589
    %v694 = vpack.c.b16 %v594, %v590
    %v695 = vpack.c.b16 %v595, %v591
    %v696 = vpack.c.b16 %v600, %v596
    %v697 = vpack.c.b16 %v601, %v597
    %v698 = vpack.c.b16 %v602, %v598
    %v699 = vpack.c.b16 %v603, %v599
    %v700 = vpack.c.b16 %v608, %v604
    %v701 = vpack.c.b16 %v609, %v605
    %v702 = vpack.c.b16 %v610, %v606
    %v703 = vpack.c.b16 %v611, %v607
    %v704 = vpack.c.b16 %v616, %v612
    %v705 = vpack.c.b16 %v617, %v613
    %v706 = vpack.c.b16 %v618, %v614
    %v707 = vpack.c.b16 %v619, %v615
    %v708 = vpack.c.b16 %v624, %v620
    %v709 = vpack.c.b16 %v625, %v621
    %v710 = vpack.c.b16 %v626, %v622
    %v711 = vpack.c.b16 %v627, %v623
    %v712 = vpack.c.b16 %v632, %v628
    %v713 = vpack.c.b16 %v633, %v629
    %v714 = vpack.c.b16 %v634, %v630
    %v715 = vpack.c.b16 %v635, %v631
    %v716 = vpack.c.b16 %v640, %v636
    %v717 = vpack.c.b16 %v641, %v637
    %v718 = vpack.c.b16 %v642, %v638
    %v719 = vpack.c.b16 %v643, %v639
    %v720 = vpack.c.b16 %v648, %v644
    %v721 = vpack.c.b16 %v649, %v645
    %v722 = vpack.c.b16 %v650, %v646
    %v723 = vpack.c.b16 %v651, %v647
    %v724 = vpack.c.b16 %v656, %v652
    %v725 = vpack.c.b16 %v657, %v653
    %v726 = vpack.c.b16 %v658, %v654
    %v727 = vpack.c.b16 %v659, %v655
    %v728 = vpack.c.b16 %v664, %v660
    %v729 = vpack.c.b16 %v665, %v661
    %v730 = vpack.c.b16 %v666, %v662
    %v731 = vpack.c.b16 %v667, %v663
    %796 = vmatprep.subr.bf16.mxu0 %v669
    %797 = vmatpush1.bf16.msra.mxu0 %v668
    %798 = vmatprep.subr.bf16.mxu0 %v673
    %799 = vmatpush1.bf16.msra.mxu0 %v672
    %800 = vmatprep.subr.bf16.mxu0 %v677
    %801 = vmatpush1.bf16.msra.mxu0 %v676
    %802 = vmatprep.subr.bf16.mxu0 %v681
    %803 = vmatpush1.bf16.msra.mxu0 %v680
    %804 = vmatprep.subr.bf16.mxu0 %v685
    %805 = vmatpush1.bf16.msra.mxu0 %v684
    %806 = vmatprep.subr.bf16.mxu0 %v689
    %807 = vmatpush1.bf16.msra.mxu0 %v688
    %808 = vmatprep.subr.bf16.mxu0 %v693
    %809 = vmatpush1.bf16.msra.mxu0 %v692
    %810 = vmatprep.subr.bf16.mxu0 %v697
    %811 = vmatpush1.bf16.msra.mxu0 %v696
    %812 = vmatprep.subr.bf16.mxu0 %v701
    %813 = vmatpush1.bf16.msra.mxu0 %v700
    %814 = vmatprep.subr.bf16.mxu0 %v705
    %815 = vmatpush1.bf16.msra.mxu0 %v704
    %816 = vmatprep.subr.bf16.mxu0 %v709
    %817 = vmatpush1.bf16.msra.mxu0 %v708
    %818 = vmatprep.subr.bf16.mxu0 %v713
    %819 = vmatpush1.bf16.msra.mxu0 %v712
    %820 = vmatprep.subr.bf16.mxu0 %v717
    %821 = vmatpush1.bf16.msra.mxu0 %v716
    %822 = vmatprep.subr.bf16.mxu0 %v721
    %823 = vmatpush1.bf16.msra.mxu0 %v720
    %824 = vmatprep.subr.bf16.mxu0 %v725
    %825 = vmatpush1.bf16.msra.mxu0 %v724
    %826 = vmatprep.subr.bf16.mxu0 %v729
    %827 = vmatpush1.bf16.msra.mxu0 %v728
    %828 = vmatprep.mubr.bf16.mxu0 %v390
    %829 = vmatmul.mubr.bf16.gmra.mrb[0].mxu0 %v389
    %v830 = vpop.f32.mrb[0].mxu0
    %v831 = vadd.f32 %v459, %v830
    %v832 = vpop.f32.mrb[0].mxu0
    %v833 = vadd.f32 %v463, %v832
    %v834 = vpop.f32.mrb[0].mxu0
    %v835 = vpop.f32.mrb[0].mxu0
    %836 = vdwg.mxu0
    %837 = vmatprep.subr.bf16.mxu0 %v671
    %838 = vmatpush1.bf16.msra.mxu0 %v670
    %839 = vmatprep.subr.bf16.mxu0 %v675
    %840 = vmatpush1.bf16.msra.mxu0 %v674
    %841 = vmatprep.subr.bf16.mxu0 %v679
    %842 = vmatpush1.bf16.msra.mxu0 %v678
    %843 = vmatprep.subr.bf16.mxu0 %v683
    %844 = vmatpush1.bf16.msra.mxu0 %v682
    %845 = vmatprep.subr.bf16.mxu0 %v687
    %846 = vmatpush1.bf16.msra.mxu0 %v686
    %847 = vmatprep.subr.bf16.mxu0 %v691
    %848 = vmatpush1.bf16.msra.mxu0 %v690
    %849 = vmatprep.subr.bf16.mxu0 %v695
    %850 = vmatpush1.bf16.msra.mxu0 %v694
    %851 = vmatprep.subr.bf16.mxu0 %v699
    %852 = vmatpush1.bf16.msra.mxu0 %v698
    %853 = vmatprep.subr.bf16.mxu0 %v703
    %854 = vmatpush1.bf16.msra.mxu0 %v702
    %855 = vmatprep.subr.bf16.mxu0 %v707
    %856 = vmatpush1.bf16.msra.mxu0 %v706
    %857 = vmatprep.subr.bf16.mxu0 %v711
    %858 = vmatpush1.bf16.msra.mxu0 %v710
    %859 = vmatprep.subr.bf16.mxu0 %v715
    %860 = vmatpush1.bf16.msra.mxu0 %v714
    %861 = vmatprep.subr.bf16.mxu0 %v719
    %862 = vmatpush1.bf16.msra.mxu0 %v718
    %863 = vmatprep.subr.bf16.mxu0 %v723
    %864 = vmatpush1.bf16.msra.mxu0 %v722
    %865 = vmatprep.subr.bf16.mxu0 %v727
    %866 = vmatpush1.bf16.msra.mxu0 %v726
    %867 = vmatprep.subr.bf16.mxu0 %v731
    %868 = vmatpush1.bf16.msra.mxu0 %v730
    %869 = vmatprep.mubr.bf16.mxu0 %v390
    %870 = vmatmul.mubr.bf16.gmra.mrb[0].mxu0 %v389
    %v871 = vpop.f32.mrb[0].mxu0
    %v872 = vadd.f32 %v467, %v871
    %v873 = vpop.f32.mrb[0].mxu0
    %v874 = vadd.f32 %v471, %v873
    %v875 = vpop.f32.mrb[0].mxu0
    %v876 = vpop.f32.mrb[0].mxu0
    %877 = vdwg.mxu0
    %878 = vst [vmem:[#allocation8] sm:$0xff] %v831
    %879 = vst [vmem:[#allocation8 + $0x8] sm:$0xff] %v833
    %880 = vst [vmem:[#allocation8 + $0x10] sm:$0xff] %v872
    %881 = vst [vmem:[#allocation8 + $0x18] sm:$0xff] %v874
    // Predicated region
    $region30: #{tpu_custom_call.1} parent=1 // pred_check
      _
    $region31: #{tpu_custom_call.1} parent=1 // pred_check_branch
      %883 = sbr.rel (0) target = $region33
    $region32: #{tpu_custom_call.1} parent=1 // pred_region
      %s885 = ssub.s32 512, 512
      %886 = vsyncadd [#allocation4], %s885
      %s888 = sshll.u32 [#allocation8], 4
      %s889 = int_to_ptr.vmem [resolvable:$true] %s888
      %891 = dma.vmem_to_hbm [thread:$0]  %s889, 512, %s4, [#allocation4]
    $region33: #{tpu_custom_call.1} parent=1 // pred_fallthru
      _
    // Predicated region
    $region34: #{tpu_custom_call.1} parent=1 // pred_check
      _
    $region35: #{tpu_custom_call.1} parent=1 // pred_check_branch
      %893 = sbr.rel (0) target = $region37
    $region36: #{tpu_custom_call.1} parent=1 // pred_region
      %894 = dma.done [#allocation4], 512
    $region37: #{tpu_custom_call.1} parent=1 // pred_fallthru
      _
    %895 = vsyncpa [#allocation3], 1
    %896 = vsyncpa [#allocation6], 1
    %897 = vsyncpa [#allocation4], 1

</llo_original>
